<compile_context>
chip_gen: v5e
topology: v5e:2x2
jax: 0.10.0
libtpu: 0.0.40
codegen_flags: <defaults>
</compile_context>

<pallas_src>
import jax
import jax.numpy as jnp
from jax.experimental import pallas as pl
from jax.experimental.pallas import tpu as pltpu

HEADS = 4
DIM = 32
HEAD_DIM = DIM // HEADS
SEQ = 8
BATCH = 2
NEG_INF = -1e30  # large finite negative: exp underflows to 0 exactly, no NaN path


def mha_kernel(x_ref, mask_ref, w_qkv_ref, b_qkv_ref, wo_ref, bo_ref, o_ref):
    B, S, _ = mask_ref.shape
    BS, D = o_ref.shape
    hd = D // HEADS
    scale = 1.0 / (hd ** 0.5)

    # Fused q/k/v projection: one (BS, 3D) @ (3D, 3D) matmul (block-diagonal weights).
    qkv = jnp.dot(x_ref[...], w_qkv_ref[...],
                  preferred_element_type=jnp.float32) + b_qkv_ref[...]
    qp = (qkv[:, 0 * D:1 * D] * scale).reshape(B, S, D)   # scale applied once
    kp = qkv[:, 1 * D:2 * D].reshape(B, S, D)
    vp = qkv[:, 2 * D:3 * D].reshape(B, S, D)

    # Mask work hoisted out of the head loop (shared by all heads / batches).
    mask = mask_ref[...]                                            # (B, S, S), 0 = masked
    neg = mask == 0.0
    row_all_masked = jnp.sum(mask, axis=-1, keepdims=True) == 0.0   # (B, S, 1)

    out = jnp.zeros((BS, D), jnp.float32)
    for h in range(HEADS):                                  # static unroll over 4 heads
        sl = slice(h * hd, (h + 1) * hd)
        qh, kh, vh = qp[:, :, sl], kp[:, :, sl], vp[:, :, sl]       # (B, S, hd)

        # Batched over B; contraction over hd expressed directly (no explicit .T).
        score = jnp.einsum('bqd,bkd->bqk', qh, kh,
                           preferred_element_type=jnp.float32)      # (B, S, S)
        score = jnp.where(neg, NEG_INF, score)

        m = jnp.max(score, axis=-1, keepdims=True)
        e = jnp.exp(score - m)
        s = jnp.sum(e, axis=-1, keepdims=True)
        alpha = e / s
        # Fully-masked query rows -> 0 (== torch's NaN masked_fill), without NaNs.
        alpha = jnp.where(row_all_masked, 0.0, alpha)

        ctx = jnp.einsum('bqk,bkd->bqd', alpha, vh,
                         preferred_element_type=jnp.float32)        # (B, S, hd)
        # Head "concat" folded into the output projection as an accumulation.
        out = out + jnp.dot(ctx.reshape(BS, hd), wo_ref[sl, :],
                            preferred_element_type=jnp.float32)

    o_ref[...] = out + bo_ref[...]


def mha_forward(q, k, v, mask, params):
    B, S, D = q.shape
    BS = B * S

    # Operand packing (in a real model the weight/bias packing is done once at init).
    x = jnp.concatenate([q.reshape(BS, D), k.reshape(BS, D), v.reshape(BS, D)],
                        axis=-1)                                    # (BS, 3D)
    z = jnp.zeros((D, D), jnp.float32)
    w_qkv = jnp.block([[params["wq"], z, z],
                       [z, params["wk"], z],
                       [z, z, params["wv"]]])                       # (3D, 3D) block-diag
    b_qkv = jnp.concatenate([params["bq"], params["bk"], params["bv"]], axis=-1)

    out = pl.pallas_call(
        mha_kernel,
        out_shape=jax.ShapeDtypeStruct((BS, D), jnp.float32),
        grid=(1,),   # single grid step: whole (tiny) problem in one invocation
        in_specs=[
            pl.BlockSpec((BS, 3 * D), lambda i: (0, 0)),
            pl.BlockSpec((B, S, S), lambda i: (0, 0, 0)),
            pl.BlockSpec((3 * D, 3 * D), lambda i: (0, 0)),
            pl.BlockSpec((1, 3 * D), lambda i: (0, 0)),
            pl.BlockSpec((D, D), lambda i: (0, 0)),
            pl.BlockSpec((1, D), lambda i: (0, 0)),
        ],
        out_specs=pl.BlockSpec((BS, D), lambda i: (0, 0)),
        compiler_params=pltpu.CompilerParams(dimension_semantics=("arbitrary",)),
    )(x, mask, w_qkv, b_qkv, params["wo"], params["bo"])
    return out.reshape(B, S, D)


def applier_forward(feed, layer_fn, k_in='x', k_out='x'):
    """JAX/Pallas analogue of Applier.forward (plain-tensor path)."""
    # TODO(synk): PackedSequence re-wrapping (broadcast=True) is host-side metadata
    #             bookkeeping with no kernel equivalent; plain arrays only here.
    if isinstance(k_in, str):
        feed[k_out] = layer_fn(feed[k_in])
    else:
        feed[k_out] = layer_fn(*[feed[kk] for kk in k_in])
    return feed


def mha_reference(q, k, v, mask, params):
    """Pure-JAX reference mirroring the PyTorch forward (eval mode)."""
    B, S, D = q.shape
    qp = q @ params["wq"] + params["bq"]
    kp = k @ params["wk"] + params["bk"]
    vp = v @ params["wv"] + params["bv"]
    qh = qp.reshape(B, S, HEADS, HEAD_DIM).transpose(0, 2, 1, 3)
    kh = kp.reshape(B, S, HEADS, HEAD_DIM).transpose(0, 2, 1, 3)
    vh = vp.reshape(B, S, HEADS, HEAD_DIM).transpose(0, 2, 1, 3)
    score = (qh / HEAD_DIM ** 0.5) @ kh.transpose(0, 1, 3, 2)
    score = jnp.where(mask[:, None] == 0, -jnp.inf, score)
    m = jnp.max(score, axis=-1, keepdims=True)
    e = jnp.exp(score - m)
    alpha = e / jnp.sum(e, axis=-1, keepdims=True)
    summ = jnp.sum(alpha, axis=-1, keepdims=True)
    alpha = jnp.where(summ != summ, 0.0, alpha)
    ctx = alpha @ vh
    ctx = ctx.transpose(0, 2, 1, 3).reshape(B, S, D)
    return ctx @ params["wo"] + params["bo"]


def init_params(key, dim):
    keys = jax.random.split(key, 8)
    scale = 0.1
    return {
        "wq": scale * jax.random.normal(keys[0], (dim, dim), jnp.float32),
        "bq": scale * jax.random.normal(keys[1], (1, dim), jnp.float32),
        "wk": scale * jax.random.normal(keys[2], (dim, dim), jnp.float32),
        "bk": scale * jax.random.normal(keys[3], (1, dim), jnp.float32),
        "wv": scale * jax.random.normal(keys[4], (dim, dim), jnp.float32),
        "bv": scale * jax.random.normal(keys[5], (1, dim), jnp.float32),
        "wo": scale * jax.random.normal(keys[6], (dim, dim), jnp.float32),
        "bo": scale * jax.random.normal(keys[7], (1, dim), jnp.float32),
    }


if __name__ == "__main__":
    key = jax.random.PRNGKey(0)
    kq, kk, kv, kp = jax.random.split(key, 4)

    q = jax.random.normal(kq, (BATCH, SEQ, DIM), jnp.float32)
    k = jax.random.normal(kk, (BATCH, SEQ, DIM), jnp.float32)
    v = jax.random.normal(kv, (BATCH, SEQ, DIM), jnp.float32)

    # padding-style mask: batch 0 uses all 8 positions, batch 1 only the first 6.
    # Query AND key padding so batch 1's last two query rows are fully masked,
    # exercising the fully-masked-row -> 0 path of the torch module.
    lengths = jnp.array([SEQ, 6], dtype=jnp.int32)
    valid = (jnp.arange(SEQ)[None, :] < lengths[:, None]).astype(jnp.float32)  # (B, S)
    mask = valid[:, :, None] * valid[:, None, :]                               # (B, Sq, Sk)

    params = init_params(kp, DIM)

    feed = {"q": q, "k": k, "v": v, "mask": mask}
    layer = lambda q_, k_, v_, m_: mha_forward(q_, k_, v_, m_, params)
    feed = applier_forward(feed, layer, k_in=("q", "k", "v", "mask"), k_out="x")
    out = jax.block_until_ready(feed["x"])

    ref = mha_reference(q, k, v, mask, params)
    assert out.shape == (BATCH, SEQ, DIM)
    assert jnp.allclose(out, ref, atol=1e-4, rtol=1e-4), "mismatch vs reference"

    print("KERNEL_OK")
</pallas_src>

<mosaic_0001>
module attributes {stable_mosaic.version = 11 : i64} {
  func.func @mha_kernel(%arg0: i32, %arg1: memref<16x96xf32, #tpu.memory_space<vmem>>, %arg2: memref<2x8x8xf32, #tpu.memory_space<vmem>>, %arg3: memref<96x96xf32, #tpu.memory_space<vmem>>, %arg4: memref<1x96xf32, #tpu.memory_space<vmem>>, %arg5: memref<32x32xf32, #tpu.memory_space<vmem>>, %arg6: memref<1x32xf32, #tpu.memory_space<vmem>>, %arg7: memref<16x32xf32, #tpu.memory_space<vmem>>) attributes {dimension_semantics = [#tpu.dimension_semantics<arbitrary>], iteration_bounds = array<i64: 1>, scalar_prefetch = 0 : i64, scratch_operands = 0 : i64, tpu.core_type = #tpu.core_type<tc>, window_params = [{pipeline_mode = #tpu.pipeline_mode<synchronous>, transform_indices = @transform_0, window_bounds = array<i64: 16, 96>}, {pipeline_mode = #tpu.pipeline_mode<synchronous>, transform_indices = @transform_1, window_bounds = array<i64: 2, 8, 8>}, {pipeline_mode = #tpu.pipeline_mode<synchronous>, transform_indices = @transform_2, window_bounds = array<i64: 96, 96>}, {pipeline_mode = #tpu.pipeline_mode<synchronous>, transform_indices = @transform_3, window_bounds = array<i64: 1, 96>}, {pipeline_mode = #tpu.pipeline_mode<synchronous>, transform_indices = @transform_4, window_bounds = array<i64: 32, 32>}, {pipeline_mode = #tpu.pipeline_mode<synchronous>, transform_indices = @transform_5, window_bounds = array<i64: 1, 32>}, {pipeline_mode = #tpu.pipeline_mode<synchronous>, transform_indices = @transform_6, window_bounds = array<i64: 16, 32>}]} {
    %c0 = arith.constant 0 : index
    %c0_0 = arith.constant 0 : index
    %0 = vector.load %arg1[%c0, %c0_0] : memref<16x96xf32, #tpu.memory_space<vmem>>, vector<16x96xf32>
    %c0_1 = arith.constant 0 : index
    %c0_2 = arith.constant 0 : index
    %1 = vector.load %arg3[%c0_1, %c0_2] : memref<96x96xf32, #tpu.memory_space<vmem>>, vector<96x96xf32>
    %cst = arith.constant dense<0.000000e+00> : vector<16x96xf32>
    %2 = tpu.matmul %0, %1, %cst {dimension_numbers = #tpu.dot_dimension_numbers<[1], [0], [0], [1], [0, 0, 1, 1], [], []>} : vector<16x96xf32>, vector<96x96xf32>, vector<16x96xf32> -> vector<16x96xf32>
    %c0_3 = arith.constant 0 : index
    %c0_4 = arith.constant 0 : index
    %3 = vector.load %arg4[%c0_3, %c0_4] : memref<1x96xf32, #tpu.memory_space<vmem>>, vector<1x96xf32>
    %4 = vector.broadcast %3 : vector<1x96xf32> to vector<16x96xf32>
    %5 = arith.addf %2, %4 : vector<16x96xf32>
    %6 = vector.extract_strided_slice %5 {offsets = [0, 0], sizes = [16, 32], strides = [1, 1]} : vector<16x96xf32> to vector<16x32xf32>
    %cst_5 = arith.constant 0.353553385 : f32
    %7 = vector.broadcast %cst_5 : f32 to vector<16x32xf32>
    %8 = arith.mulf %6, %7 : vector<16x32xf32>
    %9 = vector.shape_cast %8 : vector<16x32xf32> to vector<2x8x32xf32>
    %10 = vector.extract_strided_slice %5 {offsets = [0, 32], sizes = [16, 32], strides = [1, 1]} : vector<16x96xf32> to vector<16x32xf32>
    %11 = vector.shape_cast %10 : vector<16x32xf32> to vector<2x8x32xf32>
    %12 = vector.extract_strided_slice %5 {offsets = [0, 64], sizes = [16, 32], strides = [1, 1]} : vector<16x96xf32> to vector<16x32xf32>
    %13 = vector.shape_cast %12 : vector<16x32xf32> to vector<2x8x32xf32>
    %c0_6 = arith.constant 0 : index
    %c0_7 = arith.constant 0 : index
    %c0_8 = arith.constant 0 : index
    %14 = vector.load %arg2[%c0_6, %c0_7, %c0_8] : memref<2x8x8xf32, #tpu.memory_space<vmem>>, vector<2x8x8xf32>
    %cst_9 = arith.constant 0.000000e+00 : f32
    %15 = vector.broadcast %cst_9 : f32 to vector<2x8x8xf32>
    %16 = arith.cmpf oeq, %14, %15 : vector<2x8x8xf32>
    %cst_10 = arith.constant dense<0.000000e+00> : vector<2x8xf32>
    %17 = vector.multi_reduction <add>, %14, %cst_10 [2] : vector<2x8x8xf32> to vector<2x8xf32>
    %18 = vector.shape_cast %17 : vector<2x8xf32> to vector<2x8x1xf32>
    %cst_11 = arith.constant 0.000000e+00 : f32
    %19 = vector.broadcast %cst_11 : f32 to vector<2x8x1xf32>
    %20 = arith.cmpf oeq, %18, %19 : vector<2x8x1xf32>
    %cst_12 = arith.constant 0.000000e+00 : f32
    %21 = vector.broadcast %cst_12 : f32 to vector<16x32xf32>
    %22 = vector.extract_strided_slice %9 {offsets = [0, 0, 0], sizes = [2, 8, 8], strides = [1, 1, 1]} : vector<2x8x32xf32> to vector<2x8x8xf32>
    %23 = vector.extract_strided_slice %11 {offsets = [0, 0, 0], sizes = [2, 8, 8], strides = [1, 1, 1]} : vector<2x8x32xf32> to vector<2x8x8xf32>
    %24 = vector.extract_strided_slice %13 {offsets = [0, 0, 0], sizes = [2, 8, 8], strides = [1, 1, 1]} : vector<2x8x32xf32> to vector<2x8x8xf32>
    "tpu.trace_start"() <{level = 10 : i32, message = "bqd,bkd->bqk"}> : () -> ()
    %cst_13 = arith.constant dense<0.000000e+00> : vector<2x8x8xf32>
    %25 = tpu.matmul %22, %23, %cst_13 {dimension_numbers = #tpu.dot_dimension_numbers<[2], [2], [1], [1], [0, 0, 0, 1, 1, 1], [0], [0]>} : vector<2x8x8xf32>, vector<2x8x8xf32>, vector<2x8x8xf32> -> vector<2x8x8xf32>
    %cst_14 = arith.constant -1.000000e+30 : f32
    "tpu.trace_stop"() : () -> ()
    %26 = vector.broadcast %cst_14 : f32 to vector<2x8x8xf32>
    %27 = arith.select %16, %26, %25 : vector<2x8x8xi1>, vector<2x8x8xf32>
    %cst_15 = arith.constant dense<0xFF800000> : vector<2x8xf32>
    %28 = vector.multi_reduction <maximumf>, %27, %cst_15 [2] : vector<2x8x8xf32> to vector<2x8xf32>
    %29 = vector.shape_cast %28 : vector<2x8xf32> to vector<2x8x1xf32>
    %30 = vector.broadcast %29 : vector<2x8x1xf32> to vector<2x8x8xf32>
    %31 = arith.subf %27, %30 : vector<2x8x8xf32>
    %32 = math.exp %31 : vector<2x8x8xf32>
    %cst_16 = arith.constant dense<0.000000e+00> : vector<2x8xf32>
    %33 = vector.multi_reduction <add>, %32, %cst_16 [2] : vector<2x8x8xf32> to vector<2x8xf32>
    %34 = vector.shape_cast %33 : vector<2x8xf32> to vector<2x8x1xf32>
    %35 = vector.broadcast %34 : vector<2x8x1xf32> to vector<2x8x8xf32>
    %36 = arith.divf %32, %35 : vector<2x8x8xf32>
    %cst_17 = arith.constant 0.000000e+00 : f32
    %37 = vector.shape_cast %20 : vector<2x8x1xi1> to vector<2x8x1xi1>
    %38 = vector.broadcast %37 : vector<2x8x1xi1> to vector<2x8x8xi1>
    %39 = vector.broadcast %cst_17 : f32 to vector<2x8x8xf32>
    %40 = arith.select %38, %39, %36 : vector<2x8x8xi1>, vector<2x8x8xf32>
    "tpu.trace_start"() <{level = 10 : i32, message = "bqk,bkd->bqd"}> : () -> ()
    %cst_18 = arith.constant dense<0.000000e+00> : vector<2x8x8xf32>
    %41 = tpu.matmul %40, %24, %cst_18 {dimension_numbers = #tpu.dot_dimension_numbers<[2], [1], [1], [2], [0, 0, 0, 1, 1, 2], [0], [0]>} : vector<2x8x8xf32>, vector<2x8x8xf32>, vector<2x8x8xf32> -> vector<2x8x8xf32>
    "tpu.trace_stop"() : () -> ()
    %42 = vector.shape_cast %41 : vector<2x8x8xf32> to vector<16x8xf32>
    %c0_19 = arith.constant 0 : index
    %c0_20 = arith.constant 0 : index
    %43 = vector.load %arg5[%c0_19, %c0_20] : memref<32x32xf32, #tpu.memory_space<vmem>>, vector<8x32xf32>
    %cst_21 = arith.constant dense<0.000000e+00> : vector<16x32xf32>
    %44 = tpu.matmul %42, %43, %cst_21 {dimension_numbers = #tpu.dot_dimension_numbers<[1], [0], [0], [1], [0, 0, 1, 1], [], []>} : vector<16x8xf32>, vector<8x32xf32>, vector<16x32xf32> -> vector<16x32xf32>
    %45 = arith.addf %21, %44 : vector<16x32xf32>
    %46 = vector.extract_strided_slice %9 {offsets = [0, 0, 8], sizes = [2, 8, 8], strides = [1, 1, 1]} : vector<2x8x32xf32> to vector<2x8x8xf32>
    %47 = vector.extract_strided_slice %11 {offsets = [0, 0, 8], sizes = [2, 8, 8], strides = [1, 1, 1]} : vector<2x8x32xf32> to vector<2x8x8xf32>
    %48 = vector.extract_strided_slice %13 {offsets = [0, 0, 8], sizes = [2, 8, 8], strides = [1, 1, 1]} : vector<2x8x32xf32> to vector<2x8x8xf32>
    "tpu.trace_start"() <{level = 10 : i32, message = "bqd,bkd->bqk"}> : () -> ()
    %cst_22 = arith.constant dense<0.000000e+00> : vector<2x8x8xf32>
    %49 = tpu.matmul %46, %47, %cst_22 {dimension_numbers = #tpu.dot_dimension_numbers<[2], [2], [1], [1], [0, 0, 0, 1, 1, 1], [0], [0]>} : vector<2x8x8xf32>, vector<2x8x8xf32>, vector<2x8x8xf32> -> vector<2x8x8xf32>
    %cst_23 = arith.constant -1.000000e+30 : f32
    "tpu.trace_stop"() : () -> ()
    %50 = vector.broadcast %cst_23 : f32 to vector<2x8x8xf32>
    %51 = arith.select %16, %50, %49 : vector<2x8x8xi1>, vector<2x8x8xf32>
    %cst_24 = arith.constant dense<0xFF800000> : vector<2x8xf32>
    %52 = vector.multi_reduction <maximumf>, %51, %cst_24 [2] : vector<2x8x8xf32> to vector<2x8xf32>
    %53 = vector.shape_cast %52 : vector<2x8xf32> to vector<2x8x1xf32>
    %54 = vector.broadcast %53 : vector<2x8x1xf32> to vector<2x8x8xf32>
    %55 = arith.subf %51, %54 : vector<2x8x8xf32>
    %56 = math.exp %55 : vector<2x8x8xf32>
    %cst_25 = arith.constant dense<0.000000e+00> : vector<2x8xf32>
    %57 = vector.multi_reduction <add>, %56, %cst_25 [2] : vector<2x8x8xf32> to vector<2x8xf32>
    %58 = vector.shape_cast %57 : vector<2x8xf32> to vector<2x8x1xf32>
    %59 = vector.broadcast %58 : vector<2x8x1xf32> to vector<2x8x8xf32>
    %60 = arith.divf %56, %59 : vector<2x8x8xf32>
    %cst_26 = arith.constant 0.000000e+00 : f32
    %61 = vector.shape_cast %20 : vector<2x8x1xi1> to vector<2x8x1xi1>
    %62 = vector.broadcast %61 : vector<2x8x1xi1> to vector<2x8x8xi1>
    %63 = vector.broadcast %cst_26 : f32 to vector<2x8x8xf32>
    %64 = arith.select %62, %63, %60 : vector<2x8x8xi1>, vector<2x8x8xf32>
    "tpu.trace_start"() <{level = 10 : i32, message = "bqk,bkd->bqd"}> : () -> ()
    %cst_27 = arith.constant dense<0.000000e+00> : vector<2x8x8xf32>
    %65 = tpu.matmul %64, %48, %cst_27 {dimension_numbers = #tpu.dot_dimension_numbers<[2], [1], [1], [2], [0, 0, 0, 1, 1, 2], [0], [0]>} : vector<2x8x8xf32>, vector<2x8x8xf32>, vector<2x8x8xf32> -> vector<2x8x8xf32>
    "tpu.trace_stop"() : () -> ()
    %66 = vector.shape_cast %65 : vector<2x8x8xf32> to vector<16x8xf32>
    %c8 = arith.constant 8 : index
    %c0_28 = arith.constant 0 : index
    %67 = vector.load %arg5[%c8, %c0_28] : memref<32x32xf32, #tpu.memory_space<vmem>>, vector<8x32xf32>
    %cst_29 = arith.constant dense<0.000000e+00> : vector<16x32xf32>
    %68 = tpu.matmul %66, %67, %cst_29 {dimension_numbers = #tpu.dot_dimension_numbers<[1], [0], [0], [1], [0, 0, 1, 1], [], []>} : vector<16x8xf32>, vector<8x32xf32>, vector<16x32xf32> -> vector<16x32xf32>
    %69 = arith.addf %45, %68 : vector<16x32xf32>
    %70 = vector.extract_strided_slice %9 {offsets = [0, 0, 16], sizes = [2, 8, 8], strides = [1, 1, 1]} : vector<2x8x32xf32> to vector<2x8x8xf32>
    %71 = vector.extract_strided_slice %11 {offsets = [0, 0, 16], sizes = [2, 8, 8], strides = [1, 1, 1]} : vector<2x8x32xf32> to vector<2x8x8xf32>
    %72 = vector.extract_strided_slice %13 {offsets = [0, 0, 16], sizes = [2, 8, 8], strides = [1, 1, 1]} : vector<2x8x32xf32> to vector<2x8x8xf32>
    "tpu.trace_start"() <{level = 10 : i32, message = "bqd,bkd->bqk"}> : () -> ()
    %cst_30 = arith.constant dense<0.000000e+00> : vector<2x8x8xf32>
    %73 = tpu.matmul %70, %71, %cst_30 {dimension_numbers = #tpu.dot_dimension_numbers<[2], [2], [1], [1], [0, 0, 0, 1, 1, 1], [0], [0]>} : vector<2x8x8xf32>, vector<2x8x8xf32>, vector<2x8x8xf32> -> vector<2x8x8xf32>
    %cst_31 = arith.constant -1.000000e+30 : f32
    "tpu.trace_stop"() : () -> ()
    %74 = vector.broadcast %cst_31 : f32 to vector<2x8x8xf32>
    %75 = arith.select %16, %74, %73 : vector<2x8x8xi1>, vector<2x8x8xf32>
    %cst_32 = arith.constant dense<0xFF800000> : vector<2x8xf32>
    %76 = vector.multi_reduction <maximumf>, %75, %cst_32 [2] : vector<2x8x8xf32> to vector<2x8xf32>
    %77 = vector.shape_cast %76 : vector<2x8xf32> to vector<2x8x1xf32>
    %78 = vector.broadcast %77 : vector<2x8x1xf32> to vector<2x8x8xf32>
    %79 = arith.subf %75, %78 : vector<2x8x8xf32>
    %80 = math.exp %79 : vector<2x8x8xf32>
    %cst_33 = arith.constant dense<0.000000e+00> : vector<2x8xf32>
    %81 = vector.multi_reduction <add>, %80, %cst_33 [2] : vector<2x8x8xf32> to vector<2x8xf32>
    %82 = vector.shape_cast %81 : vector<2x8xf32> to vector<2x8x1xf32>
    %83 = vector.broadcast %82 : vector<2x8x1xf32> to vector<2x8x8xf32>
    %84 = arith.divf %80, %83 : vector<2x8x8xf32>
    %cst_34 = arith.constant 0.000000e+00 : f32
    %85 = vector.shape_cast %20 : vector<2x8x1xi1> to vector<2x8x1xi1>
    %86 = vector.broadcast %85 : vector<2x8x1xi1> to vector<2x8x8xi1>
    %87 = vector.broadcast %cst_34 : f32 to vector<2x8x8xf32>
    %88 = arith.select %86, %87, %84 : vector<2x8x8xi1>, vector<2x8x8xf32>
    "tpu.trace_start"() <{level = 10 : i32, message = "bqk,bkd->bqd"}> : () -> ()
    %cst_35 = arith.constant dense<0.000000e+00> : vector<2x8x8xf32>
    %89 = tpu.matmul %88, %72, %cst_35 {dimension_numbers = #tpu.dot_dimension_numbers<[2], [1], [1], [2], [0, 0, 0, 1, 1, 2], [0], [0]>} : vector<2x8x8xf32>, vector<2x8x8xf32>, vector<2x8x8xf32> -> vector<2x8x8xf32>
    "tpu.trace_stop"() : () -> ()
    %90 = vector.shape_cast %89 : vector<2x8x8xf32> to vector<16x8xf32>
    %c16 = arith.constant 16 : index
    %c0_36 = arith.constant 0 : index
    %91 = vector.load %arg5[%c16, %c0_36] : memref<32x32xf32, #tpu.memory_space<vmem>>, vector<8x32xf32>
    %cst_37 = arith.constant dense<0.000000e+00> : vector<16x32xf32>
    %92 = tpu.matmul %90, %91, %cst_37 {dimension_numbers = #tpu.dot_dimension_numbers<[1], [0], [0], [1], [0, 0, 1, 1], [], []>} : vector<16x8xf32>, vector<8x32xf32>, vector<16x32xf32> -> vector<16x32xf32>
    %93 = arith.addf %69, %92 : vector<16x32xf32>
    %94 = vector.extract_strided_slice %9 {offsets = [0, 0, 24], sizes = [2, 8, 8], strides = [1, 1, 1]} : vector<2x8x32xf32> to vector<2x8x8xf32>
    %95 = vector.extract_strided_slice %11 {offsets = [0, 0, 24], sizes = [2, 8, 8], strides = [1, 1, 1]} : vector<2x8x32xf32> to vector<2x8x8xf32>
    %96 = vector.extract_strided_slice %13 {offsets = [0, 0, 24], sizes = [2, 8, 8], strides = [1, 1, 1]} : vector<2x8x32xf32> to vector<2x8x8xf32>
    "tpu.trace_start"() <{level = 10 : i32, message = "bqd,bkd->bqk"}> : () -> ()
    %cst_38 = arith.constant dense<0.000000e+00> : vector<2x8x8xf32>
    %97 = tpu.matmul %94, %95, %cst_38 {dimension_numbers = #tpu.dot_dimension_numbers<[2], [2], [1], [1], [0, 0, 0, 1, 1, 1], [0], [0]>} : vector<2x8x8xf32>, vector<2x8x8xf32>, vector<2x8x8xf32> -> vector<2x8x8xf32>
    %cst_39 = arith.constant -1.000000e+30 : f32
    "tpu.trace_stop"() : () -> ()
    %98 = vector.broadcast %cst_39 : f32 to vector<2x8x8xf32>
    %99 = arith.select %16, %98, %97 : vector<2x8x8xi1>, vector<2x8x8xf32>
    %cst_40 = arith.constant dense<0xFF800000> : vector<2x8xf32>
    %100 = vector.multi_reduction <maximumf>, %99, %cst_40 [2] : vector<2x8x8xf32> to vector<2x8xf32>
    %101 = vector.shape_cast %100 : vector<2x8xf32> to vector<2x8x1xf32>
    %102 = vector.broadcast %101 : vector<2x8x1xf32> to vector<2x8x8xf32>
    %103 = arith.subf %99, %102 : vector<2x8x8xf32>
    %104 = math.exp %103 : vector<2x8x8xf32>
    %cst_41 = arith.constant dense<0.000000e+00> : vector<2x8xf32>
    %105 = vector.multi_reduction <add>, %104, %cst_41 [2] : vector<2x8x8xf32> to vector<2x8xf32>
    %106 = vector.shape_cast %105 : vector<2x8xf32> to vector<2x8x1xf32>
    %107 = vector.broadcast %106 : vector<2x8x1xf32> to vector<2x8x8xf32>
    %108 = arith.divf %104, %107 : vector<2x8x8xf32>
    %cst_42 = arith.constant 0.000000e+00 : f32
    %109 = vector.shape_cast %20 : vector<2x8x1xi1> to vector<2x8x1xi1>
    %110 = vector.broadcast %109 : vector<2x8x1xi1> to vector<2x8x8xi1>
    %111 = vector.broadcast %cst_42 : f32 to vector<2x8x8xf32>
    %112 = arith.select %110, %111, %108 : vector<2x8x8xi1>, vector<2x8x8xf32>
    "tpu.trace_start"() <{level = 10 : i32, message = "bqk,bkd->bqd"}> : () -> ()
    %cst_43 = arith.constant dense<0.000000e+00> : vector<2x8x8xf32>
    %113 = tpu.matmul %112, %96, %cst_43 {dimension_numbers = #tpu.dot_dimension_numbers<[2], [1], [1], [2], [0, 0, 0, 1, 1, 2], [0], [0]>} : vector<2x8x8xf32>, vector<2x8x8xf32>, vector<2x8x8xf32> -> vector<2x8x8xf32>
    "tpu.trace_stop"() : () -> ()
    %114 = vector.shape_cast %113 : vector<2x8x8xf32> to vector<16x8xf32>
    %c24 = arith.constant 24 : index
    %c0_44 = arith.constant 0 : index
    %115 = vector.load %arg5[%c24, %c0_44] : memref<32x32xf32, #tpu.memory_space<vmem>>, vector<8x32xf32>
    %cst_45 = arith.constant dense<0.000000e+00> : vector<16x32xf32>
    %116 = tpu.matmul %114, %115, %cst_45 {dimension_numbers = #tpu.dot_dimension_numbers<[1], [0], [0], [1], [0, 0, 1, 1], [], []>} : vector<16x8xf32>, vector<8x32xf32>, vector<16x32xf32> -> vector<16x32xf32>
    %117 = arith.addf %93, %116 : vector<16x32xf32>
    %c0_46 = arith.constant 0 : index
    %c0_47 = arith.constant 0 : index
    %118 = vector.load %arg6[%c0_46, %c0_47] : memref<1x32xf32, #tpu.memory_space<vmem>>, vector<1x32xf32>
    %119 = vector.broadcast %118 : vector<1x32xf32> to vector<16x32xf32>
    %120 = arith.addf %117, %119 : vector<16x32xf32>
    %c0_48 = arith.constant 0 : index
    %c0_49 = arith.constant 0 : index
    %121 = vector.load %arg7[%c0_48, %c0_49] : memref<16x32xf32, #tpu.memory_space<vmem>>, vector<16x32xf32>
    tpu.vector_store %arg7[%c0_48, %c0_49], %120 {strides = array<i32>} : memref<16x32xf32, #tpu.memory_space<vmem>>, vector<16x32xf32>,
    return
  }
  func.func @transform_0(%arg0: i32) -> (i32, i32) {
    %c0_i32 = arith.constant 0 : i32
    %c0_i32_0 = arith.constant 0 : i32
    %c0_i32_1 = arith.constant 0 : i32
    return %c0_i32, %c0_i32_0 : i32, i32
  }
  func.func @transform_1(%arg0: i32) -> (i32, i32, i32) {
    %c0_i32 = arith.constant 0 : i32
    %c0_i32_0 = arith.constant 0 : i32
    %c0_i32_1 = arith.constant 0 : i32
    %c0_i32_2 = arith.constant 0 : i32
    return %c0_i32, %c0_i32_0, %c0_i32_1 : i32, i32, i32
  }
  func.func @transform_2(%arg0: i32) -> (i32, i32) {
    %c0_i32 = arith.constant 0 : i32
    %c0_i32_0 = arith.constant 0 : i32
    %c0_i32_1 = arith.constant 0 : i32
    return %c0_i32, %c0_i32_0 : i32, i32
  }
  func.func @transform_3(%arg0: i32) -> (i32, i32) {
    %c0_i32 = arith.constant 0 : i32
    %c0_i32_0 = arith.constant 0 : i32
    %c0_i32_1 = arith.constant 0 : i32
    return %c0_i32, %c0_i32_0 : i32, i32
  }
  func.func @transform_4(%arg0: i32) -> (i32, i32) {
    %c0_i32 = arith.constant 0 : i32
    %c0_i32_0 = arith.constant 0 : i32
    %c0_i32_1 = arith.constant 0 : i32
    return %c0_i32, %c0_i32_0 : i32, i32
  }
  func.func @transform_5(%arg0: i32) -> (i32, i32) {
    %c0_i32 = arith.constant 0 : i32
    %c0_i32_0 = arith.constant 0 : i32
    %c0_i32_1 = arith.constant 0 : i32
    return %c0_i32, %c0_i32_0 : i32, i32
  }
  func.func @transform_6(%arg0: i32) -> (i32, i32) {
    %c0_i32 = arith.constant 0 : i32
    %c0_i32_0 = arith.constant 0 : i32
    %c0_i32_1 = arith.constant 0 : i32
    return %c0_i32, %c0_i32_0 : i32, i32
  }
}

</mosaic_0001>

<llo_original>
// kernel: tpu_custom_call.1
$region0: #{tpu_custom_call.1}
  #allocation0 [shape = 'u32[]', space=smem, size = 0x4, offset = 0x4, fixed_abs, tag = 'smem constant byte address 0x4 - core index']
  #allocation1 [shape = 'u32[72,128]{1,0:T(1,128)}', space=vmem, size = 0x9000, scoped, tag = 'internal scratch']
  %s0 = inlined_call_operand.hbm [shape: f32[16,96], index: 0, kind: input, shape index: {}]
  %s1 = inlined_call_operand.hbm [shape: f32[2,8,8], index: 1, kind: input, shape index: {}]
  %s2 = inlined_call_operand.hbm [shape: f32[96,96], index: 2, kind: input, shape index: {}]
  %s3 = inlined_call_operand.vmem [shape: f32[1,96], index: 3, kind: input, shape index: {}]
  %s4 = inlined_call_operand.hbm [shape: f32[32,32], index: 4, kind: input, shape index: {}]
  %s5 = inlined_call_operand.vmem [shape: f32[1,32], index: 5, kind: input, shape index: {}]
  %s6 = inlined_call_operand.hbm [shape: f32[16,32], index: 6, kind: output, shape index: {}]
  %s7 = sld [smem:[#allocation0]]
  $region50: #{tpu_custom_call.1} parent=0
    _
  %s9 = ssub.s32 1, %s7
  %s10 = scalar_select 0, %s9, %s7
  $region1: #{tpu_custom_call.1} parent=0
    #allocation2 [shape = 'u8[8192]{0}', space=vmem, size = 0x2000, scoped, tag = 'input window, operand 0, single buffered']
    #allocation3 [shape = 's32[1]{0}', space=sflag, size = 0x4, scoped, tag = 'scoped memory for tpu_custom_call.1']
    #allocation4 [shape = 's32[1]{0}', space=sflag, size = 0x4, scoped, tag = 'scoped memory for tpu_custom_call.1']
    #allocation5 [shape = 'u8[8192]{0}', space=vmem, size = 0x2000, scoped, tag = 'input window, operand 1, single buffered']
    #allocation6 [shape = 's32[1]{0}', space=sflag, size = 0x4, scoped, tag = 'scoped memory for tpu_custom_call.1']
    #allocation7 [shape = 'u8[49152]{0}', space=vmem, size = 0xc000, scoped, tag = 'input window, operand 2, single buffered']
    #allocation8 [shape = 'u8[16384]{0}', space=vmem, size = 0x4000, scoped, tag = 'input window, operand 4, single buffered']
    #allocation9 [shape = 's32[1]{0}', space=sflag, size = 0x4, scoped, tag = 'scoped memory for tpu_custom_call.1']
    #allocation10 [shape = 'u8[8192]{0}', space=vmem, size = 0x2000, scoped, tag = 'output window, operand 0, single buffered']
    %11 = vsyncpa [#allocation3], 0
    %12 = vsyncpa [#allocation6], 0
    %13 = vsyncpa [#allocation9], 0
    %14 = vsyncpa [#allocation4], 0
    // Predicated region
    $region2: #{tpu_custom_call.1} parent=1 // pred_check
      _
    $region3: #{tpu_custom_call.1} parent=1 // pred_check_branch
      %16 = sbr.rel (0) target = $region5
    $region4: #{tpu_custom_call.1} parent=1 // pred_region
      %18 = vsyncadd [#allocation3], 0
      %s19 = sshll.u32 %s0, 4
      %s20 = int_to_ptr.hbm [resolvable:$true] %s19
      %s21 = sshll.u32 [#allocation2], 4
      %s22 = int_to_ptr.vmem [resolvable:$true] %s21
      %27 = dma.hbm_to_vmem [thread:$0]  %s20, 256, %s22, [#allocation3], 128, 128, 8
    $region5: #{tpu_custom_call.1} parent=1 // pred_fallthru
      _
    // Predicated region
    $region6: #{tpu_custom_call.1} parent=1 // pred_check
      _
    $region7: #{tpu_custom_call.1} parent=1 // pred_check_branch
      %29 = sbr.rel (0) target = $region9
    $region8: #{tpu_custom_call.1} parent=1 // pred_region
      %31 = vsyncadd [#allocation6], 0
      %s32 = sshll.u32 %s1, 4
      %s33 = int_to_ptr.hbm [resolvable:$true] %s32
      %s34 = sshll.u32 [#allocation5], 4
      %s35 = int_to_ptr.vmem [resolvable:$true] %s34
      %40 = dma.hbm_to_vmem [thread:$0]  %s33, 256, %s35, [#allocation6], 128, 128, 8
    $region9: #{tpu_custom_call.1} parent=1 // pred_fallthru
      _
    // Predicated region
    $region10: #{tpu_custom_call.1} parent=1 // pred_check
      _
    $region11: #{tpu_custom_call.1} parent=1 // pred_check_branch
      %42 = sbr.rel (0) target = $region13
    $region12: #{tpu_custom_call.1} parent=1 // pred_region
      %44 = vsyncadd [#allocation6], 0
      %s45 = sshll.u32 %s2, 4
      %s46 = int_to_ptr.hbm [resolvable:$true] %s45
      %s47 = sshll.u32 [#allocation7], 4
      %s48 = int_to_ptr.vmem [resolvable:$true] %s47
      %53 = dma.hbm_to_vmem [thread:$0]  %s46, 1536, %s48, [#allocation6], 128, 128, 8
    $region13: #{tpu_custom_call.1} parent=1 // pred_fallthru
      _
    // Predicated region
    $region14: #{tpu_custom_call.1} parent=1 // pred_check
      _
    $region15: #{tpu_custom_call.1} parent=1 // pred_check_branch
      %55 = sbr.rel (0) target = $region17
    $region16: #{tpu_custom_call.1} parent=1 // pred_region
      _
    $region17: #{tpu_custom_call.1} parent=1 // pred_fallthru
      _
    // Predicated region
    $region18: #{tpu_custom_call.1} parent=1 // pred_check
      _
    $region19: #{tpu_custom_call.1} parent=1 // pred_check_branch
      %57 = sbr.rel (0) target = $region21
    $region20: #{tpu_custom_call.1} parent=1 // pred_region
      %59 = vsyncadd [#allocation9], 0
      %s60 = sshll.u32 %s4, 4
      %s61 = int_to_ptr.hbm [resolvable:$true] %s60
      %s62 = sshll.u32 [#allocation8], 4
      %s63 = int_to_ptr.vmem [resolvable:$true] %s62
      %68 = dma.hbm_to_vmem [thread:$0]  %s61, 512, %s63, [#allocation9], 128, 128, 8
    $region21: #{tpu_custom_call.1} parent=1 // pred_fallthru
      _
    // Predicated region
    $region22: #{tpu_custom_call.1} parent=1 // pred_check
      _
    $region23: #{tpu_custom_call.1} parent=1 // pred_check_branch
      %70 = sbr.rel (0) target = $region25
    $region24: #{tpu_custom_call.1} parent=1 // pred_region
      _
    $region25: #{tpu_custom_call.1} parent=1 // pred_fallthru
      _
    // Predicated region
    $region26: #{tpu_custom_call.1} parent=1 // pred_check
      _
    $region27: #{tpu_custom_call.1} parent=1 // pred_check_branch
      %72 = sbr.rel (0) target = $region29
    $region28: #{tpu_custom_call.1} parent=1 // pred_region
      %74 = dma.done [#allocation3], 256
    $region29: #{tpu_custom_call.1} parent=1 // pred_fallthru
      _
    // Predicated region
    $region30: #{tpu_custom_call.1} parent=1 // pred_check
      _
    $region31: #{tpu_custom_call.1} parent=1 // pred_check_branch
      %76 = sbr.rel (0) target = $region33
    $region32: #{tpu_custom_call.1} parent=1 // pred_region
      %78 = dma.done [#allocation6], 256
    $region33: #{tpu_custom_call.1} parent=1 // pred_fallthru
      _
    // Predicated region
    $region34: #{tpu_custom_call.1} parent=1 // pred_check
      _
    $region35: #{tpu_custom_call.1} parent=1 // pred_check_branch
      %80 = sbr.rel (0) target = $region37
    $region36: #{tpu_custom_call.1} parent=1 // pred_region
      %82 = dma.done [#allocation6], 1536
    $region37: #{tpu_custom_call.1} parent=1 // pred_fallthru
      _
    // Predicated region
    $region38: #{tpu_custom_call.1} parent=1 // pred_check
      _
    $region39: #{tpu_custom_call.1} parent=1 // pred_check_branch
      %84 = sbr.rel (0) target = $region41
    $region40: #{tpu_custom_call.1} parent=1 // pred_region
      %86 = dma.done [#allocation9], 512
    $region41: #{tpu_custom_call.1} parent=1 // pred_fallthru
      _
    %v87 = vld [vmem:[#allocation2] sm:$0xff]
    %v88 = vld [vmem:[#allocation2 + $0x8] sm:$0xff]
    %v89 = vld [vmem:[#allocation7] sm:$0xff]
    %v90 = vld [vmem:[#allocation7 + $0x8] sm:$0xff]
    %v91 = vld [vmem:[#allocation7 + $0x10] sm:$0xff]
    %v92 = vld [vmem:[#allocation7 + $0x18] sm:$0xff]
    %v93 = vld [vmem:[#allocation7 + $0x20] sm:$0xff]
    %v94 = vld [vmem:[#allocation7 + $0x28] sm:$0xff]
    %v95 = vld [vmem:[#allocation7 + $0x30] sm:$0xff]
    %v96 = vld [vmem:[#allocation7 + $0x38] sm:$0xff]
    %v97 = vld [vmem:[#allocation7 + $0x40] sm:$0xff]
    %v98 = vld [vmem:[#allocation7 + $0x48] sm:$0xff]
    %v99 = vld [vmem:[#allocation7 + $0x50] sm:$0xff]
    %v100 = vld [vmem:[#allocation7 + $0x58] sm:$0xff]
    %v101 = vld [vmem:[%s3] sm:$0x1]
    %v103 = vperm.slane %v101, 0
    %vm105 = vcmask 785408
    %v107 = vsel %vm105, %v87, 0
    %v110 = vsel %vm105, %v88, 0
    %112 = vmatpush.msra.mxu0 0.0
    %113 = vmatpush.msra.mxu0 0.0
    %114 = vmatpush.msra.mxu0 0.0
    %115 = vmatpush.msra.mxu0 0.0
    %116 = vmatpush.msra.mxu0 %v100
    %117 = vmatpush.msra.mxu0 %v99
    %118 = vmatpush.msra.mxu0 %v98
    %119 = vmatpush.msra.mxu0 %v97
    %120 = vmatpush.msra.mxu0 %v96
    %121 = vmatpush.msra.mxu0 %v95
    %122 = vmatpush.msra.mxu0 %v94
    %123 = vmatpush.msra.mxu0 %v93
    %124 = vmatpush.msra.mxu0 %v92
    %125 = vmatpush.msra.mxu0 %v91
    %126 = vmatpush.msra.mxu0 %v90
    %127 = vmatpush.msra.mxu0 %v89
    %128 = vmatmul.f32.gmra.mxu0 %v107
    %v129 = vpop.f32.mrf.mxu0
    %v130 = vadd.f32 %v103, %v129
    %131 = vmatmul.f32.gmra.mxu0 %v110
    %v132 = vpop.f32.mrf.mxu0
    %v133 = vadd.f32 %v103, %v132
    %134 = vdwg.mxu0
    %v135 = vmul.f32 %v130, 0.35355338
    %v136 = vmul.f32 %v133, 0.35355338
    %v137 = vld [vmem:[#allocation5] sm:$0xff]
    %v138 = vld [vmem:[#allocation5 + $0x8] sm:$0xff]
    %vm139 = vcmp.eq.f32.partialorder %v137, 0.0
    %vm140 = vcmp.eq.f32.partialorder %v138, 0.0
    %vm141 = vcmask 64512
    %v142 = vsel %vm141, %v137, 0.0
    %143 = vadd.xlane.f32.xlu0 %v142
    %v144 = vpop.xlane.xlu0 %143
    %v145 = vsel %vm141, %v138, 0.0
    %146 = vadd.xlane.f32.xlu0 %v145
    %v147 = vpop.xlane.xlu0 %146
    %vm148 = vcmp.eq.f32.partialorder %v144, 0.0
    %vm149 = vcmp.eq.f32.partialorder %v147, 0.0
    %151 = vrot.lane.b32.xlu0 %v130, 96
    %v152 = vpop.permute.xlu0 %151
    %v154 = vsel %vm141, %v135, 0
    %v156 = vsel %vm141, %v152, 0
    %158 = vmatpush.xpose.msra.mxu0 0.0
    %159 = vmatpush.xpose.msra.mxu0 0.0
    %160 = vmatpush.xpose.msra.mxu0 0.0
    %161 = vmatpush.xpose.msra.mxu0 0.0
    %162 = vmatpush.xpose.msra.mxu0 0.0
    %163 = vmatpush.xpose.msra.mxu0 0.0
    %164 = vmatpush.xpose.msra.mxu0 0.0
    %165 = vmatpush.xpose.msra.mxu0 0.0
    %166 = vmatpush.xpose.msra.mxu0 0.0
    %167 = vmatpush.xpose.msra.mxu0 0.0
    %168 = vmatpush.xpose.msra.mxu0 0.0
    %169 = vmatpush.xpose.msra.mxu0 0.0
    %170 = vmatpush.xpose.msra.mxu0 0.0
    %171 = vmatpush.xpose.msra.mxu0 0.0
    %172 = vmatpush.xpose.msra.mxu0 0.0
    %173 = vmatpush.xpose.msra.mxu0 %v156
    %174 = vmatmul.f32.gmra.mxu0 %v154
    %v175 = vpop.f32.mrf.mxu0
    %v176 = vadd.f32 0.0, %v175
    %177 = vdwg.mxu0
    %179 = vrot.lane.b32.xlu0 %v133, 96
    %v180 = vpop.permute.xlu0 %179
    %v182 = vsel %vm141, %v136, 0
    %v184 = vsel %vm141, %v180, 0
    %186 = vmatpush.xpose.msra.mxu0 0.0
    %187 = vmatpush.xpose.msra.mxu0 0.0
    %188 = vmatpush.xpose.msra.mxu0 0.0
    %189 = vmatpush.xpose.msra.mxu0 0.0
    %190 = vmatpush.xpose.msra.mxu0 0.0
    %191 = vmatpush.xpose.msra.mxu0 0.0
    %192 = vmatpush.xpose.msra.mxu0 0.0
    %193 = vmatpush.xpose.msra.mxu0 0.0
    %194 = vmatpush.xpose.msra.mxu0 0.0
    %195 = vmatpush.xpose.msra.mxu0 0.0
    %196 = vmatpush.xpose.msra.mxu0 0.0
    %197 = vmatpush.xpose.msra.mxu0 0.0
    %198 = vmatpush.xpose.msra.mxu0 0.0
    %199 = vmatpush.xpose.msra.mxu0 0.0
    %200 = vmatpush.xpose.msra.mxu0 0.0
    %201 = vmatpush.xpose.msra.mxu0 %v184
    %202 = vmatmul.f32.gmra.mxu0 %v182
    %v203 = vpop.f32.mrf.mxu0
    %v204 = vadd.f32 0.0, %v203
    %205 = vdwg.mxu0
    %v206 = vsel %vm139, -1e+30, %v176
    %v207 = vsel %vm140, -1e+30, %v204
    %v208 = vsel %vm141, %v206, -inf
    %209 = vmax.xlane.f32.xlu0 %v208
    %v210 = vpop.xlane.xlu0 %209
    %v211 = vsel %vm141, %v207, -inf
    %212 = vmax.xlane.f32.xlu0 %v211
    %v213 = vpop.xlane.xlu0 %212
    %v214 = vsub.f32 %v206, %v210
    %v215 = vsub.f32 %v207, %v213
    %v216 = vmul.f32 %v214, 1.442695
    %v217 = vpow.pop %v216
    %v218 = vmul.f32 %v215, 1.442695
    %v219 = vpow.pop %v218
    %v220 = vsel %vm141, %v217, 0.0
    %221 = vadd.xlane.f32.xlu0 %v220
    %v222 = vpop.xlane.xlu0 %221
    %v223 = vsel %vm141, %v219, 0.0
    %224 = vadd.xlane.f32.xlu0 %v223
    %v225 = vpop.xlane.xlu0 %224
    %v226 = vrcp.pop %v222
    %v227 = vmul.f32 %v222, %v226
    %v228 = vsub.f32 1.0, %v227
    %v229 = vmul.f32 %v226, %v228
    %v230 = vadd.f32 %v226, %v229
    %vm231 = vweird.f32 %v222
    %vm232 = vweird.f32 %v226
    %vm233 = vmor %vm231, %vm232
    %v234 = vsel %vm233, %v226, %v230
    %v235 = vand.u32 2147483647, %v222
    %vm236 = vcmp.eq.f32.partialorder %v235, 8.507059e+37
    %v237 = vand.u32 %v222, 2147483648
    %v238 = vor.u32 1.1754944e-38, %v237
    %v239 = vsel %vm236, %v238, %v234
    %v240 = vmul.f32 %v217, %v239
    %v241 = vrcp.pop %v225
    %v242 = vmul.f32 %v225, %v241
    %v243 = vsub.f32 1.0, %v242
    %v244 = vmul.f32 %v241, %v243
    %v245 = vadd.f32 %v241, %v244
    %vm246 = vweird.f32 %v225
    %vm247 = vweird.f32 %v241
    %vm248 = vmor %vm246, %vm247
    %v249 = vsel %vm248, %v241, %v245
    %v250 = vand.u32 2147483647, %v225
    %vm251 = vcmp.eq.f32.partialorder %v250, 8.507059e+37
    %v252 = vand.u32 %v225, 2147483648
    %v253 = vor.u32 1.1754944e-38, %v252
    %v254 = vsel %vm251, %v253, %v249
    %v255 = vmul.f32 %v219, %v254
    %v256 = vsel %vm148, 1, 0
    %v257 = vsel %vm149, 1, 0
    %vm258 = vcmp.eq.s32.totalorder %v256, 1
    %vm259 = vcmp.eq.s32.totalorder %v257, 1
    %v260 = vsel %vm258, 0.0, %v240
    %v261 = vsel %vm259, 0.0, %v255
    %262 = vrot.lane.b32.xlu0 %v130, 64
    %v263 = vpop.permute.xlu0 %262
    %v266 = vsel %vm141, %v260, 0
    %268 = vmatpush.msra.mxu0 0.0
    %269 = vmatpush.msra.mxu0 0.0
    %270 = vmatpush.msra.mxu0 0.0
    %271 = vmatpush.msra.mxu0 0.0
    %272 = vmatpush.msra.mxu0 0.0
    %273 = vmatpush.msra.mxu0 0.0
    %274 = vmatpush.msra.mxu0 0.0
    %275 = vmatpush.msra.mxu0 0.0
    %276 = vmatpush.msra.mxu0 0.0
    %277 = vmatpush.msra.mxu0 0.0
    %278 = vmatpush.msra.mxu0 0.0
    %279 = vmatpush.msra.mxu0 0.0
    %280 = vmatpush.msra.mxu0 0.0
    %281 = vmatpush.msra.mxu0 0.0
    %282 = vmatpush.msra.mxu0 0.0
    %283 = vmatpush.msra.mxu0 %v263
    %284 = vmatmul.f32.gmra.mxu0 %v266
    %v285 = vpop.f32.mrf.mxu0
    %v286 = vadd.f32 0.0, %v285
    %287 = vdwg.mxu0
    %288 = vrot.lane.b32.xlu0 %v133, 64
    %v289 = vpop.permute.xlu0 %288
    %v292 = vsel %vm141, %v261, 0
    %294 = vmatpush.msra.mxu0 0.0
    %295 = vmatpush.msra.mxu0 0.0
    %296 = vmatpush.msra.mxu0 0.0
    %297 = vmatpush.msra.mxu0 0.0
    %298 = vmatpush.msra.mxu0 0.0
    %299 = vmatpush.msra.mxu0 0.0
    %300 = vmatpush.msra.mxu0 0.0
    %301 = vmatpush.msra.mxu0 0.0
    %302 = vmatpush.msra.mxu0 0.0
    %303 = vmatpush.msra.mxu0 0.0
    %304 = vmatpush.msra.mxu0 0.0
    %305 = vmatpush.msra.mxu0 0.0
    %306 = vmatpush.msra.mxu0 0.0
    %307 = vmatpush.msra.mxu0 0.0
    %308 = vmatpush.msra.mxu0 0.0
    %309 = vmatpush.msra.mxu0 %v289
    %310 = vmatmul.f32.gmra.mxu0 %v292
    %v311 = vpop.f32.mrf.mxu0
    %v312 = vadd.f32 0.0, %v311
    %313 = vdwg.mxu0
    %v314 = vld [vmem:[#allocation8] sm:$0xff]
    %315 = vrot.lane.b32.xlu0 %v135, 120
    %v316 = vpop.permute.xlu0 %315
    %317 = vrot.lane.b32.xlu0 %v130, 88
    %v318 = vpop.permute.xlu0 %317
    %v319 = vsel %vm141, %v316, 0
    %v321 = vsel %vm141, %v318, 0
    %323 = vmatpush.xpose.msra.mxu0 0.0
    %324 = vmatpush.xpose.msra.mxu0 0.0
    %325 = vmatpush.xpose.msra.mxu0 0.0
    %326 = vmatpush.xpose.msra.mxu0 0.0
    %327 = vmatpush.xpose.msra.mxu0 0.0
    %328 = vmatpush.xpose.msra.mxu0 0.0
    %329 = vmatpush.xpose.msra.mxu0 0.0
    %330 = vmatpush.xpose.msra.mxu0 0.0
    %331 = vmatpush.xpose.msra.mxu0 0.0
    %332 = vmatpush.xpose.msra.mxu0 0.0
    %333 = vmatpush.xpose.msra.mxu0 0.0
    %334 = vmatpush.xpose.msra.mxu0 0.0
    %335 = vmatpush.xpose.msra.mxu0 0.0
    %336 = vmatpush.xpose.msra.mxu0 0.0
    %337 = vmatpush.xpose.msra.mxu0 0.0
    %338 = vmatpush.xpose.msra.mxu0 %v321
    %339 = vmatmul.f32.gmra.mxu0 %v319
    %v340 = vpop.f32.mrf.mxu0
    %v341 = vadd.f32 0.0, %v340
    %342 = vdwg.mxu0
    %343 = vrot.lane.b32.xlu0 %v136, 120
    %v344 = vpop.permute.xlu0 %343
    %345 = vrot.lane.b32.xlu0 %v133, 88
    %v346 = vpop.permute.xlu0 %345
    %v347 = vsel %vm141, %v344, 0
    %v349 = vsel %vm141, %v346, 0
    %351 = vmatpush.xpose.msra.mxu0 0.0
    %352 = vmatpush.xpose.msra.mxu0 0.0
    %353 = vmatpush.xpose.msra.mxu0 0.0
    %354 = vmatpush.xpose.msra.mxu0 0.0
    %355 = vmatpush.xpose.msra.mxu0 0.0
    %356 = vmatpush.xpose.msra.mxu0 0.0
    %357 = vmatpush.xpose.msra.mxu0 0.0
    %358 = vmatpush.xpose.msra.mxu0 0.0
    %359 = vmatpush.xpose.msra.mxu0 0.0
    %360 = vmatpush.xpose.msra.mxu0 0.0
    %361 = vmatpush.xpose.msra.mxu0 0.0
    %362 = vmatpush.xpose.msra.mxu0 0.0
    %363 = vmatpush.xpose.msra.mxu0 0.0
    %364 = vmatpush.xpose.msra.mxu0 0.0
    %365 = vmatpush.xpose.msra.mxu0 0.0
    %366 = vmatpush.xpose.msra.mxu0 %v349
    %367 = vmatmul.f32.gmra.mxu0 %v347
    %v368 = vpop.f32.mrf.mxu0
    %v369 = vadd.f32 0.0, %v368
    %370 = vdwg.mxu0
    %v371 = vsel %vm139, -1e+30, %v341
    %v372 = vsel %vm140, -1e+30, %v369
    %v373 = vsel %vm141, %v371, -inf
    %374 = vmax.xlane.f32.xlu0 %v373
    %v375 = vpop.xlane.xlu0 %374
    %v376 = vsel %vm141, %v372, -inf
    %377 = vmax.xlane.f32.xlu0 %v376
    %v378 = vpop.xlane.xlu0 %377
    %v379 = vsub.f32 %v371, %v375
    %v380 = vsub.f32 %v372, %v378
    %v381 = vmul.f32 %v379, 1.442695
    %v382 = vpow.pop %v381
    %v383 = vmul.f32 %v380, 1.442695
    %v384 = vpow.pop %v383
    %v385 = vsel %vm141, %v382, 0.0
    %386 = vadd.xlane.f32.xlu0 %v385
    %v387 = vpop.xlane.xlu0 %386
    %v388 = vsel %vm141, %v384, 0.0
    %389 = vadd.xlane.f32.xlu0 %v388
    %v390 = vpop.xlane.xlu0 %389
    %v391 = vrcp.pop %v387
    %v392 = vmul.f32 %v387, %v391
    %v393 = vsub.f32 1.0, %v392
    %v394 = vmul.f32 %v391, %v393
    %v395 = vadd.f32 %v391, %v394
    %vm396 = vweird.f32 %v387
    %vm397 = vweird.f32 %v391
    %vm398 = vmor %vm396, %vm397
    %v399 = vsel %vm398, %v391, %v395
    %v400 = vand.u32 2147483647, %v387
    %vm401 = vcmp.eq.f32.partialorder %v400, 8.507059e+37
    %v402 = vand.u32 %v387, 2147483648
    %v403 = vor.u32 1.1754944e-38, %v402
    %v404 = vsel %vm401, %v403, %v399
    %v405 = vmul.f32 %v382, %v404
    %v406 = vrcp.pop %v390
    %v407 = vmul.f32 %v390, %v406
    %v408 = vsub.f32 1.0, %v407
    %v409 = vmul.f32 %v406, %v408
    %v410 = vadd.f32 %v406, %v409
    %vm411 = vweird.f32 %v390
    %vm412 = vweird.f32 %v406
    %vm413 = vmor %vm411, %vm412
    %v414 = vsel %vm413, %v406, %v410
    %v415 = vand.u32 2147483647, %v390
    %vm416 = vcmp.eq.f32.partialorder %v415, 8.507059e+37
    %v417 = vand.u32 %v390, 2147483648
    %v418 = vor.u32 1.1754944e-38, %v417
    %v419 = vsel %vm416, %v418, %v414
    %v420 = vmul.f32 %v384, %v419
    %v421 = vsel %vm258, 0.0, %v405
    %v422 = vsel %vm259, 0.0, %v420
    %423 = vrot.lane.b32.xlu0 %v130, 56
    %v424 = vpop.permute.xlu0 %423
    %v427 = vsel %vm141, %v421, 0
    %429 = vmatpush.msra.mxu0 0.0
    %430 = vmatpush.msra.mxu0 0.0
    %431 = vmatpush.msra.mxu0 0.0
    %432 = vmatpush.msra.mxu0 0.0
    %433 = vmatpush.msra.mxu0 0.0
    %434 = vmatpush.msra.mxu0 0.0
    %435 = vmatpush.msra.mxu0 0.0
    %436 = vmatpush.msra.mxu0 0.0
    %437 = vmatpush.msra.mxu0 0.0
    %438 = vmatpush.msra.mxu0 0.0
    %439 = vmatpush.msra.mxu0 0.0
    %440 = vmatpush.msra.mxu0 0.0
    %441 = vmatpush.msra.mxu0 0.0
    %442 = vmatpush.msra.mxu0 0.0
    %443 = vmatpush.msra.mxu0 0.0
    %444 = vmatpush.msra.mxu0 %v424
    %445 = vmatmul.f32.gmra.mxu0 %v427
    %v446 = vpop.f32.mrf.mxu0
    %v447 = vadd.f32 0.0, %v446
    %448 = vdwg.mxu0
    %449 = vrot.lane.b32.xlu0 %v133, 56
    %v450 = vpop.permute.xlu0 %449
    %v453 = vsel %vm141, %v422, 0
    %455 = vmatpush.msra.mxu0 0.0
    %456 = vmatpush.msra.mxu0 0.0
    %457 = vmatpush.msra.mxu0 0.0
    %458 = vmatpush.msra.mxu0 0.0
    %459 = vmatpush.msra.mxu0 0.0
    %460 = vmatpush.msra.mxu0 0.0
    %461 = vmatpush.msra.mxu0 0.0
    %462 = vmatpush.msra.mxu0 0.0
    %463 = vmatpush.msra.mxu0 0.0
    %464 = vmatpush.msra.mxu0 0.0
    %465 = vmatpush.msra.mxu0 0.0
    %466 = vmatpush.msra.mxu0 0.0
    %467 = vmatpush.msra.mxu0 0.0
    %468 = vmatpush.msra.mxu0 0.0
    %469 = vmatpush.msra.mxu0 0.0
    %470 = vmatpush.msra.mxu0 %v450
    %471 = vmatmul.f32.gmra.mxu0 %v453
    %v472 = vpop.f32.mrf.mxu0
    %v473 = vadd.f32 0.0, %v472
    %474 = vdwg.mxu0
    %v475 = vld [vmem:[#allocation8 + $0x8] sm:$0xff]
    %v477 = vsel %vm141, %v447, 0
    %v480 = vsel %vm141, %v473, 0
    %482 = vmatpush.msra.mxu0 0.0
    %483 = vmatpush.msra.mxu0 0.0
    %484 = vmatpush.msra.mxu0 0.0
    %485 = vmatpush.msra.mxu0 0.0
    %486 = vmatpush.msra.mxu0 0.0
    %487 = vmatpush.msra.mxu0 0.0
    %488 = vmatpush.msra.mxu0 0.0
    %489 = vmatpush.msra.mxu0 0.0
    %490 = vmatpush.msra.mxu0 0.0
    %491 = vmatpush.msra.mxu0 0.0
    %492 = vmatpush.msra.mxu0 0.0
    %493 = vmatpush.msra.mxu0 0.0
    %494 = vmatpush.msra.mxu0 0.0
    %495 = vmatpush.msra.mxu0 0.0
    %496 = vmatpush.msra.mxu0 0.0
    %497 = vmatpush.msra.mxu0 %v475
    %498 = vmatmul.f32.gmra.mxu0 %v477
    %v499 = vpop.f32.mrf.mxu0
    %v500 = vadd.f32 0.0, %v499
    %501 = vmatmul.f32.gmra.mxu0 %v480
    %v502 = vpop.f32.mrf.mxu0
    %v503 = vadd.f32 0.0, %v502
    %504 = vdwg.mxu0
    %v506 = vsel %vm141, %v286, 0
    %v509 = vsel %vm141, %v312, 0
    %511 = vmatpush.msra.mxu0 0.0
    %512 = vmatpush.msra.mxu0 0.0
    %513 = vmatpush.msra.mxu0 0.0
    %514 = vmatpush.msra.mxu0 0.0
    %515 = vmatpush.msra.mxu0 0.0
    %516 = vmatpush.msra.mxu0 0.0
    %517 = vmatpush.msra.mxu0 0.0
    %518 = vmatpush.msra.mxu0 0.0
    %519 = vmatpush.msra.mxu0 0.0
    %520 = vmatpush.msra.mxu0 0.0
    %521 = vmatpush.msra.mxu0 0.0
    %522 = vmatpush.msra.mxu0 0.0
    %523 = vmatpush.msra.mxu0 0.0
    %524 = vmatpush.msra.mxu0 0.0
    %525 = vmatpush.msra.mxu0 0.0
    %526 = vmatpush.msra.mxu0 %v314
    %527 = vmatmul.f32.gmra.mxu0 %v506
    %v528 = vpop.f32.mrf.mxu0
    %v529 = vadd.f32 %v500, %v528
    %530 = vmatmul.f32.gmra.mxu0 %v509
    %v531 = vpop.f32.mrf.mxu0
    %v532 = vadd.f32 %v503, %v531
    %533 = vdwg.mxu0
    %534 = vrot.lane.b32.xlu0 %v135, 112
    %v535 = vpop.permute.xlu0 %534
    %536 = vrot.lane.b32.xlu0 %v130, 80
    %v537 = vpop.permute.xlu0 %536
    %v538 = vsel %vm141, %v535, 0
    %v540 = vsel %vm141, %v537, 0
    %542 = vmatpush.xpose.msra.mxu0 0.0
    %543 = vmatpush.xpose.msra.mxu0 0.0
    %544 = vmatpush.xpose.msra.mxu0 0.0
    %545 = vmatpush.xpose.msra.mxu0 0.0
    %546 = vmatpush.xpose.msra.mxu0 0.0
    %547 = vmatpush.xpose.msra.mxu0 0.0
    %548 = vmatpush.xpose.msra.mxu0 0.0
    %549 = vmatpush.xpose.msra.mxu0 0.0
    %550 = vmatpush.xpose.msra.mxu0 0.0
    %551 = vmatpush.xpose.msra.mxu0 0.0
    %552 = vmatpush.xpose.msra.mxu0 0.0
    %553 = vmatpush.xpose.msra.mxu0 0.0
    %554 = vmatpush.xpose.msra.mxu0 0.0
    %555 = vmatpush.xpose.msra.mxu0 0.0
    %556 = vmatpush.xpose.msra.mxu0 0.0
    %557 = vmatpush.xpose.msra.mxu0 %v540
    %558 = vmatmul.f32.gmra.mxu0 %v538
    %v559 = vpop.f32.mrf.mxu0
    %v560 = vadd.f32 0.0, %v559
    %561 = vdwg.mxu0
    %562 = vrot.lane.b32.xlu0 %v136, 112
    %v563 = vpop.permute.xlu0 %562
    %564 = vrot.lane.b32.xlu0 %v133, 80
    %v565 = vpop.permute.xlu0 %564
    %v566 = vsel %vm141, %v563, 0
    %v568 = vsel %vm141, %v565, 0
    %570 = vmatpush.xpose.msra.mxu0 0.0
    %571 = vmatpush.xpose.msra.mxu0 0.0
    %572 = vmatpush.xpose.msra.mxu0 0.0
    %573 = vmatpush.xpose.msra.mxu0 0.0
    %574 = vmatpush.xpose.msra.mxu0 0.0
    %575 = vmatpush.xpose.msra.mxu0 0.0
    %576 = vmatpush.xpose.msra.mxu0 0.0
    %577 = vmatpush.xpose.msra.mxu0 0.0
    %578 = vmatpush.xpose.msra.mxu0 0.0
    %579 = vmatpush.xpose.msra.mxu0 0.0
    %580 = vmatpush.xpose.msra.mxu0 0.0
    %581 = vmatpush.xpose.msra.mxu0 0.0
    %582 = vmatpush.xpose.msra.mxu0 0.0
    %583 = vmatpush.xpose.msra.mxu0 0.0
    %584 = vmatpush.xpose.msra.mxu0 0.0
    %585 = vmatpush.xpose.msra.mxu0 %v568
    %586 = vmatmul.f32.gmra.mxu0 %v566
    %v587 = vpop.f32.mrf.mxu0
    %v588 = vadd.f32 0.0, %v587
    %589 = vdwg.mxu0
    %v590 = vsel %vm139, -1e+30, %v560
    %v591 = vsel %vm140, -1e+30, %v588
    %v592 = vsel %vm141, %v590, -inf
    %593 = vmax.xlane.f32.xlu0 %v592
    %v594 = vpop.xlane.xlu0 %593
    %v595 = vsel %vm141, %v591, -inf
    %596 = vmax.xlane.f32.xlu0 %v595
    %v597 = vpop.xlane.xlu0 %596
    %v598 = vsub.f32 %v590, %v594
    %v599 = vsub.f32 %v591, %v597
    %v600 = vmul.f32 %v598, 1.442695
    %v601 = vpow.pop %v600
    %v602 = vmul.f32 %v599, 1.442695
    %v603 = vpow.pop %v602
    %v604 = vsel %vm141, %v601, 0.0
    %605 = vadd.xlane.f32.xlu0 %v604
    %v606 = vpop.xlane.xlu0 %605
    %v607 = vsel %vm141, %v603, 0.0
    %608 = vadd.xlane.f32.xlu0 %v607
    %v609 = vpop.xlane.xlu0 %608
    %v610 = vrcp.pop %v606
    %v611 = vmul.f32 %v606, %v610
    %v612 = vsub.f32 1.0, %v611
    %v613 = vmul.f32 %v610, %v612
    %v614 = vadd.f32 %v610, %v613
    %vm615 = vweird.f32 %v606
    %vm616 = vweird.f32 %v610
    %vm617 = vmor %vm615, %vm616
    %v618 = vsel %vm617, %v610, %v614
    %v619 = vand.u32 2147483647, %v606
    %vm620 = vcmp.eq.f32.partialorder %v619, 8.507059e+37
    %v621 = vand.u32 %v606, 2147483648
    %v622 = vor.u32 1.1754944e-38, %v621
    %v623 = vsel %vm620, %v622, %v618
    %v624 = vmul.f32 %v601, %v623
    %v625 = vrcp.pop %v609
    %v626 = vmul.f32 %v609, %v625
    %v627 = vsub.f32 1.0, %v626
    %v628 = vmul.f32 %v625, %v627
    %v629 = vadd.f32 %v625, %v628
    %vm630 = vweird.f32 %v609
    %vm631 = vweird.f32 %v625
    %vm632 = vmor %vm630, %vm631
    %v633 = vsel %vm632, %v625, %v629
    %v634 = vand.u32 2147483647, %v609
    %vm635 = vcmp.eq.f32.partialorder %v634, 8.507059e+37
    %v636 = vand.u32 %v609, 2147483648
    %v637 = vor.u32 1.1754944e-38, %v636
    %v638 = vsel %vm635, %v637, %v633
    %v639 = vmul.f32 %v603, %v638
    %v640 = vsel %vm258, 0.0, %v624
    %v641 = vsel %vm259, 0.0, %v639
    %642 = vrot.lane.b32.xlu0 %v130, 48
    %v643 = vpop.permute.xlu0 %642
    %v646 = vsel %vm141, %v640, 0
    %648 = vmatpush.msra.mxu0 0.0
    %649 = vmatpush.msra.mxu0 0.0
    %650 = vmatpush.msra.mxu0 0.0
    %651 = vmatpush.msra.mxu0 0.0
    %652 = vmatpush.msra.mxu0 0.0
    %653 = vmatpush.msra.mxu0 0.0
    %654 = vmatpush.msra.mxu0 0.0
    %655 = vmatpush.msra.mxu0 0.0
    %656 = vmatpush.msra.mxu0 0.0
    %657 = vmatpush.msra.mxu0 0.0
    %658 = vmatpush.msra.mxu0 0.0
    %659 = vmatpush.msra.mxu0 0.0
    %660 = vmatpush.msra.mxu0 0.0
    %661 = vmatpush.msra.mxu0 0.0
    %662 = vmatpush.msra.mxu0 0.0
    %663 = vmatpush.msra.mxu0 %v643
    %664 = vmatmul.f32.gmra.mxu0 %v646
    %v665 = vpop.f32.mrf.mxu0
    %v666 = vadd.f32 0.0, %v665
    %667 = vdwg.mxu0
    %668 = vrot.lane.b32.xlu0 %v133, 48
    %v669 = vpop.permute.xlu0 %668
    %v672 = vsel %vm141, %v641, 0
    %674 = vmatpush.msra.mxu0 0.0
    %675 = vmatpush.msra.mxu0 0.0
    %676 = vmatpush.msra.mxu0 0.0
    %677 = vmatpush.msra.mxu0 0.0
    %678 = vmatpush.msra.mxu0 0.0
    %679 = vmatpush.msra.mxu0 0.0
    %680 = vmatpush.msra.mxu0 0.0
    %681 = vmatpush.msra.mxu0 0.0
    %682 = vmatpush.msra.mxu0 0.0
    %683 = vmatpush.msra.mxu0 0.0
    %684 = vmatpush.msra.mxu0 0.0
    %685 = vmatpush.msra.mxu0 0.0
    %686 = vmatpush.msra.mxu0 0.0
    %687 = vmatpush.msra.mxu0 0.0
    %688 = vmatpush.msra.mxu0 0.0
    %689 = vmatpush.msra.mxu0 %v669
    %690 = vmatmul.f32.gmra.mxu0 %v672
    %v691 = vpop.f32.mrf.mxu0
    %v692 = vadd.f32 0.0, %v691
    %693 = vdwg.mxu0
    %v694 = vld [vmem:[#allocation8 + $0x10] sm:$0xff]
    %v696 = vsel %vm141, %v666, 0
    %v699 = vsel %vm141, %v692, 0
    %701 = vmatpush.msra.mxu0 0.0
    %702 = vmatpush.msra.mxu0 0.0
    %703 = vmatpush.msra.mxu0 0.0
    %704 = vmatpush.msra.mxu0 0.0
    %705 = vmatpush.msra.mxu0 0.0
    %706 = vmatpush.msra.mxu0 0.0
    %707 = vmatpush.msra.mxu0 0.0
    %708 = vmatpush.msra.mxu0 0.0
    %709 = vmatpush.msra.mxu0 0.0
    %710 = vmatpush.msra.mxu0 0.0
    %711 = vmatpush.msra.mxu0 0.0
    %712 = vmatpush.msra.mxu0 0.0
    %713 = vmatpush.msra.mxu0 0.0
    %714 = vmatpush.msra.mxu0 0.0
    %715 = vmatpush.msra.mxu0 0.0
    %716 = vmatpush.msra.mxu0 %v694
    %717 = vmatmul.f32.gmra.mxu0 %v696
    %v718 = vpop.f32.mrf.mxu0
    %v719 = vadd.f32 0.0, %v718
    %720 = vmatmul.f32.gmra.mxu0 %v699
    %v721 = vpop.f32.mrf.mxu0
    %v722 = vadd.f32 0.0, %v721
    %723 = vdwg.mxu0
    %v724 = vadd.f32 %v529, %v719
    %v725 = vadd.f32 %v532, %v722
    %726 = vrot.lane.b32.xlu0 %v135, 104
    %v727 = vpop.permute.xlu0 %726
    %728 = vrot.lane.b32.xlu0 %v130, 72
    %v729 = vpop.permute.xlu0 %728
    %v730 = vsel %vm141, %v727, 0
    %v732 = vsel %vm141, %v729, 0
    %734 = vmatpush.xpose.msra.mxu0 0.0
    %735 = vmatpush.xpose.msra.mxu0 0.0
    %736 = vmatpush.xpose.msra.mxu0 0.0
    %737 = vmatpush.xpose.msra.mxu0 0.0
    %738 = vmatpush.xpose.msra.mxu0 0.0
    %739 = vmatpush.xpose.msra.mxu0 0.0
    %740 = vmatpush.xpose.msra.mxu0 0.0
    %741 = vmatpush.xpose.msra.mxu0 0.0
    %742 = vmatpush.xpose.msra.mxu0 0.0
    %743 = vmatpush.xpose.msra.mxu0 0.0
    %744 = vmatpush.xpose.msra.mxu0 0.0
    %745 = vmatpush.xpose.msra.mxu0 0.0
    %746 = vmatpush.xpose.msra.mxu0 0.0
    %747 = vmatpush.xpose.msra.mxu0 0.0
    %748 = vmatpush.xpose.msra.mxu0 0.0
    %749 = vmatpush.xpose.msra.mxu0 %v732
    %750 = vmatmul.f32.gmra.mxu0 %v730
    %v751 = vpop.f32.mrf.mxu0
    %v752 = vadd.f32 0.0, %v751
    %753 = vdwg.mxu0
    %754 = vrot.lane.b32.xlu0 %v136, 104
    %v755 = vpop.permute.xlu0 %754
    %756 = vrot.lane.b32.xlu0 %v133, 72
    %v757 = vpop.permute.xlu0 %756
    %v758 = vsel %vm141, %v755, 0
    %v760 = vsel %vm141, %v757, 0
    %762 = vmatpush.xpose.msra.mxu0 0.0
    %763 = vmatpush.xpose.msra.mxu0 0.0
    %764 = vmatpush.xpose.msra.mxu0 0.0
    %765 = vmatpush.xpose.msra.mxu0 0.0
    %766 = vmatpush.xpose.msra.mxu0 0.0
    %767 = vmatpush.xpose.msra.mxu0 0.0
    %768 = vmatpush.xpose.msra.mxu0 0.0
    %769 = vmatpush.xpose.msra.mxu0 0.0
    %770 = vmatpush.xpose.msra.mxu0 0.0
    %771 = vmatpush.xpose.msra.mxu0 0.0
    %772 = vmatpush.xpose.msra.mxu0 0.0
    %773 = vmatpush.xpose.msra.mxu0 0.0
    %774 = vmatpush.xpose.msra.mxu0 0.0
    %775 = vmatpush.xpose.msra.mxu0 0.0
    %776 = vmatpush.xpose.msra.mxu0 0.0
    %777 = vmatpush.xpose.msra.mxu0 %v760
    %778 = vmatmul.f32.gmra.mxu0 %v758
    %v779 = vpop.f32.mrf.mxu0
    %v780 = vadd.f32 0.0, %v779
    %781 = vdwg.mxu0
    %v782 = vsel %vm139, -1e+30, %v752
    %v783 = vsel %vm140, -1e+30, %v780
    %v784 = vsel %vm141, %v782, -inf
    %785 = vmax.xlane.f32.xlu0 %v784
    %v786 = vpop.xlane.xlu0 %785
    %v787 = vsel %vm141, %v783, -inf
    %788 = vmax.xlane.f32.xlu0 %v787
    %v789 = vpop.xlane.xlu0 %788
    %v790 = vsub.f32 %v782, %v786
    %v791 = vsub.f32 %v783, %v789
    %v792 = vmul.f32 %v790, 1.442695
    %v793 = vpow.pop %v792
    %v794 = vmul.f32 %v791, 1.442695
    %v795 = vpow.pop %v794
    %v796 = vsel %vm141, %v793, 0.0
    %797 = vadd.xlane.f32.xlu0 %v796
    %v798 = vpop.xlane.xlu0 %797
    %v799 = vsel %vm141, %v795, 0.0
    %800 = vadd.xlane.f32.xlu0 %v799
    %v801 = vpop.xlane.xlu0 %800
    %v802 = vrcp.pop %v798
    %v803 = vmul.f32 %v798, %v802
    %v804 = vsub.f32 1.0, %v803
    %v805 = vmul.f32 %v802, %v804
    %v806 = vadd.f32 %v802, %v805
    %vm807 = vweird.f32 %v798
    %vm808 = vweird.f32 %v802
    %vm809 = vmor %vm807, %vm808
    %v810 = vsel %vm809, %v802, %v806
    %v811 = vand.u32 2147483647, %v798
    %vm812 = vcmp.eq.f32.partialorder %v811, 8.507059e+37
    %v813 = vand.u32 %v798, 2147483648
    %v814 = vor.u32 1.1754944e-38, %v813
    %v815 = vsel %vm812, %v814, %v810
    %v816 = vmul.f32 %v793, %v815
    %v817 = vrcp.pop %v801
    %v818 = vmul.f32 %v801, %v817
    %v819 = vsub.f32 1.0, %v818
    %v820 = vmul.f32 %v817, %v819
    %v821 = vadd.f32 %v817, %v820
    %vm822 = vweird.f32 %v801
    %vm823 = vweird.f32 %v817
    %vm824 = vmor %vm822, %vm823
    %v825 = vsel %vm824, %v817, %v821
    %v826 = vand.u32 2147483647, %v801
    %vm827 = vcmp.eq.f32.partialorder %v826, 8.507059e+37
    %v828 = vand.u32 %v801, 2147483648
    %v829 = vor.u32 1.1754944e-38, %v828
    %v830 = vsel %vm827, %v829, %v825
    %v831 = vmul.f32 %v795, %v830
    %v832 = vsel %vm258, 0.0, %v816
    %v833 = vsel %vm259, 0.0, %v831
    %834 = vrot.lane.b32.xlu0 %v130, 40
    %v835 = vpop.permute.xlu0 %834
    %v838 = vsel %vm141, %v832, 0
    %840 = vmatpush.msra.mxu0 0.0
    %841 = vmatpush.msra.mxu0 0.0
    %842 = vmatpush.msra.mxu0 0.0
    %843 = vmatpush.msra.mxu0 0.0
    %844 = vmatpush.msra.mxu0 0.0
    %845 = vmatpush.msra.mxu0 0.0
    %846 = vmatpush.msra.mxu0 0.0
    %847 = vmatpush.msra.mxu0 0.0
    %848 = vmatpush.msra.mxu0 0.0
    %849 = vmatpush.msra.mxu0 0.0
    %850 = vmatpush.msra.mxu0 0.0
    %851 = vmatpush.msra.mxu0 0.0
    %852 = vmatpush.msra.mxu0 0.0
    %853 = vmatpush.msra.mxu0 0.0
    %854 = vmatpush.msra.mxu0 0.0
    %855 = vmatpush.msra.mxu0 %v835
    %856 = vmatmul.f32.gmra.mxu0 %v838
    %v857 = vpop.f32.mrf.mxu0
    %v858 = vadd.f32 0.0, %v857
    %859 = vdwg.mxu0
    %860 = vrot.lane.b32.xlu0 %v133, 40
    %v861 = vpop.permute.xlu0 %860
    %v864 = vsel %vm141, %v833, 0
    %866 = vmatpush.msra.mxu0 0.0
    %867 = vmatpush.msra.mxu0 0.0
    %868 = vmatpush.msra.mxu0 0.0
    %869 = vmatpush.msra.mxu0 0.0
    %870 = vmatpush.msra.mxu0 0.0
    %871 = vmatpush.msra.mxu0 0.0
    %872 = vmatpush.msra.mxu0 0.0
    %873 = vmatpush.msra.mxu0 0.0
    %874 = vmatpush.msra.mxu0 0.0
    %875 = vmatpush.msra.mxu0 0.0
    %876 = vmatpush.msra.mxu0 0.0
    %877 = vmatpush.msra.mxu0 0.0
    %878 = vmatpush.msra.mxu0 0.0
    %879 = vmatpush.msra.mxu0 0.0
    %880 = vmatpush.msra.mxu0 0.0
    %881 = vmatpush.msra.mxu0 %v861
    %882 = vmatmul.f32.gmra.mxu0 %v864
    %v883 = vpop.f32.mrf.mxu0
    %v884 = vadd.f32 0.0, %v883
    %885 = vdwg.mxu0
    %v886 = vld [vmem:[#allocation8 + $0x18] sm:$0xff]
    %v888 = vsel %vm141, %v858, 0
    %v891 = vsel %vm141, %v884, 0
    %893 = vmatpush.msra.mxu0 0.0
    %894 = vmatpush.msra.mxu0 0.0
    %895 = vmatpush.msra.mxu0 0.0
    %896 = vmatpush.msra.mxu0 0.0
    %897 = vmatpush.msra.mxu0 0.0
    %898 = vmatpush.msra.mxu0 0.0
    %899 = vmatpush.msra.mxu0 0.0
    %900 = vmatpush.msra.mxu0 0.0
    %901 = vmatpush.msra.mxu0 0.0
    %902 = vmatpush.msra.mxu0 0.0
    %903 = vmatpush.msra.mxu0 0.0
    %904 = vmatpush.msra.mxu0 0.0
    %905 = vmatpush.msra.mxu0 0.0
    %906 = vmatpush.msra.mxu0 0.0
    %907 = vmatpush.msra.mxu0 0.0
    %908 = vmatpush.msra.mxu0 %v886
    %909 = vmatmul.f32.gmra.mxu0 %v888
    %v910 = vpop.f32.mrf.mxu0
    %v911 = vadd.f32 0.0, %v910
    %912 = vmatmul.f32.gmra.mxu0 %v891
    %v913 = vpop.f32.mrf.mxu0
    %v914 = vadd.f32 0.0, %v913
    %915 = vdwg.mxu0
    %v916 = vadd.f32 %v724, %v911
    %v917 = vadd.f32 %v725, %v914
    %v918 = vld [vmem:[%s5] sm:$0x1]
    %v920 = vperm.slane %v918, 0
    %v922 = vadd.f32 %v916, %v920
    %v923 = vadd.f32 %v917, %v920
    %vm924 = vcmask 261120
    %925 = vst.msk [vmem:[#allocation10] sm:$0xff] %vm924, %v922
    %926 = vst.msk [vmem:[#allocation10 + $0x8] sm:$0xff] %vm924, %v923
    // Predicated region
    $region42: #{tpu_custom_call.1} parent=1 // pred_check
      _
    $region43: #{tpu_custom_call.1} parent=1 // pred_check_branch
      %928 = sbr.rel (0) target = $region45
    $region44: #{tpu_custom_call.1} parent=1 // pred_region
      %930 = vsyncadd [#allocation4], 0
      %s931 = sshll.u32 [#allocation10], 4
      %s932 = int_to_ptr.vmem [resolvable:$true] %s931
      %s933 = sshll.u32 %s6, 4
      %s934 = int_to_ptr.hbm [resolvable:$true] %s933
      %939 = dma.vmem_to_hbm [thread:$0]  %s932, 256, %s934, [#allocation4], 128, 128, 8
    $region45: #{tpu_custom_call.1} parent=1 // pred_fallthru
      _
    // Predicated region
    $region46: #{tpu_custom_call.1} parent=1 // pred_check
      _
    $region47: #{tpu_custom_call.1} parent=1 // pred_check_branch
      %941 = sbr.rel (0) target = $region49
    $region48: #{tpu_custom_call.1} parent=1 // pred_region
      %943 = dma.done [#allocation4], 256
    $region49: #{tpu_custom_call.1} parent=1 // pred_fallthru
      _
    %944 = vsyncpa [#allocation3], 1
    %945 = vsyncpa [#allocation6], 1
    %946 = vsyncpa [#allocation9], 1
    %947 = vsyncpa [#allocation4], 1

</llo_original>
